<compile_context>
chip_gen: v6e
topology: v6e:2x2x1
jax: 0.10.0
libtpu: 0.0.40
codegen_flags: <defaults>
</compile_context>

<pallas_src>
import math
import numpy as np

import jax
import jax.numpy as jnp
from jax.experimental import pallas as pl
from jax.experimental.pallas import tpu as pltpu


# ----------------------------------------------------------------------------
# parameter construction (deterministic, synthetic)
# ----------------------------------------------------------------------------
def upsample_matrix(out_size, in_size):
    """Linear-interp weights of one axis of trilinear upsampling, align_corners=False."""
    ratio = in_size / out_size
    Wm = np.zeros((out_size, in_size), dtype=np.float32)
    for o in range(out_size):
        src = max(ratio * (o + 0.5) - 0.5, 0.0)
        i0 = min(int(math.floor(src)), in_size - 1)
        i1 = min(i0 + 1, in_size - 1)
        lam = src - i0
        Wm[o, i0] += 1.0 - lam
        Wm[o, i1] += lam
    return Wm


def make_params(key, C, reduction, H, W):
    Cr = C // reduction
    keys = iter(jax.random.split(key, 32))

    def nrm(shape, s=0.3):
        return np.asarray(jax.random.normal(next(keys), shape, dtype=jnp.float32)) * s

    def bn_fold(n):
        g = 1.0 + 0.1 * np.asarray(jax.random.normal(next(keys), (n,), dtype=jnp.float32))
        b = 0.1 * np.asarray(jax.random.normal(next(keys), (n,), dtype=jnp.float32))
        m = 0.1 * np.asarray(jax.random.normal(next(keys), (n,), dtype=jnp.float32))
        v = 1.0 + 0.2 * np.abs(np.asarray(jax.random.normal(next(keys), (n,), dtype=jnp.float32)))
        s = g / np.sqrt(v + 1e-5)
        return s, b - m * s

    # fc path: Linear(C,Cr) -> BN1d(Cr) -> ELU -> Linear(Cr,C) -> BN1d(C) -> Sigmoid
    W_fc1, b_fc1 = nrm((Cr, C)), nrm((Cr,), 0.1)
    s1, t1 = bn_fold(Cr)
    W_fc2, b_fc2 = nrm((C, Cr)), nrm((C,), 0.1)
    s2, t2 = bn_fold(C)

    # sc path
    w_c1, b_c1 = nrm((C,)), float(nrm((), 0.1))     # Conv3d(C, 1, 1x1x1)
    ssc1, tsc1 = bn_fold(1)                         # BN3d(1)
    w3, b_c3 = nrm((3, 3, 3)), float(nrm((), 0.1))  # Conv3d(1, 1, 3x3x3, pad 1)
    s3, t3 = bn_fold(1)                             # BN3d(1)
    w_c2, b_c2 = nrm((C,)), nrm((C,), 0.1)          # Conv3d(1, C, 1x1x1)
    ssc2, tsc2 = bn_fold(C)                         # BN3d(C)

    wfold = float(ssc1[0]) * w_c1
    cshift = float(ssc1[0]) * b_c1 + float(tsc1[0])
    w3f = float(s3[0]) * w3
    shift3 = float(s3[0]) * b_c3 + float(t3[0])
    sz = ssc2 * w_c2
    tz = ssc2 * b_c2 + tsc2

    Hp, Wp = H // 8, W // 8
    Wh = upsample_matrix(H, Hp)                    # (H, Hp)
    Ww = upsample_matrix(W, Wp)                    # (W, Wp)
    # combined upsample operator: u_flat[h*W+w] = sum_m q_flat[m] * Umap[m, h*W+w]
    Umap = np.kron(Wh, Ww).T                       # (Hp*Wp, H*W)

    f32 = lambda a: jnp.asarray(a, jnp.float32)
    return dict(
        wfold=f32(wfold), cshift=float(cshift),
        W1f=f32(W_fc1.T * s1[None, :]), b1f=f32((b_fc1 * s1 + t1)[None, :]),
        W2f=f32(W_fc2.T * s2[None, :]), b2f=f32((b_fc2 * s2 + t2)[None, :]),
        w3f=np.asarray(w3f, np.float32), shift3=float(shift3),
        sz=f32(sz), tz=f32(tz),
        Wh=f32(Wh), Wwt=f32(Ww.T), Umap=f32(Umap),
    )


def _elu(x):
    return jnp.where(x > 0, x, jnp.exp(x) - 1.0)


def _sigmoid(x):
    return 1.0 / (1.0 + jnp.exp(-x))


# ----------------------------------------------------------------------------
# Pallas implementation
# ----------------------------------------------------------------------------
def se_layer_cs_pallas(x, p):
    B, C, D, H, W = x.shape
    assert H % 8 == 0 and W % 8 == 0
    Hp, Wp = H // 8, W // 8
    DH = D * H
    HW = H * W

    cshift = float(p["cshift"])
    shift3 = float(p["shift3"])
    w3f = np.asarray(p["w3f"], np.float32)

    # metadata-only reshape (row-major): spatial (D*H, W) tile per channel
    x4 = x.reshape(B, C, DH, W)

    # ---- kernel 1: global avg-pool (for the SE-FC path)
    #                + Conv3d(C,1,1x1x1)+BN+ELU channel collapse
    #                + fused MaxPool3d(1,8,8)  (sc map never leaves VMEM)
    def k1(x_ref, wf_ref, ym_ref, pool_ref):
        xb = x_ref[0]                                            # (C, D*H, W)

        # per-channel mean over all spatial positions
        s = jnp.sum(xb, axis=2, keepdims=True)                   # (C, D*H, 1)
        s = jnp.sum(s, axis=1, keepdims=True)                    # (C, 1, 1)
        ym_ref[...] = (s * (1.0 / (DH * W)))[None]               # (1, C, 1, 1)

        # C -> 1 channel collapse (+ folded BN) + ELU
        # (VALU broadcast+sum; an MXU (1,C)x(C,S) dot only pays off for C >= 32)
        wf = wf_ref[...]                                         # (C, 1)
        pre = jnp.sum(xb * wf[:, :, None], axis=0) + cshift      # (D*H, W)
        af = jnp.where(pre > 0, pre, jnp.exp(pre) - 1.0)         # ELU

        # MaxPool3d(1,8,8): H-pool via sublane groups of 8, W-pool per lane window
        r1 = jnp.max(af.reshape(D * Hp, 8, W), axis=1)           # (D*Hp, W)
        for p_ in range(Wp):
            pool_ref[0, :, p_:p_ + 1] = jnp.max(
                r1[:, 8 * p_:8 * (p_ + 1)], axis=1, keepdims=True)

    ym, pooled_raw = pl.pallas_call(
        k1,
        out_shape=(jax.ShapeDtypeStruct((B, C, 1, 1), jnp.float32),
                   jax.ShapeDtypeStruct((B, D * Hp, Wp), jnp.float32)),
        grid=(B,),
        in_specs=[pl.BlockSpec((1, C, DH, W), lambda b: (b, 0, 0, 0)),
                  pl.BlockSpec((C, 1), lambda b: (0, 0))],
        out_specs=(pl.BlockSpec((1, C, 1, 1), lambda b: (b, 0, 0, 0)),
                   pl.BlockSpec((1, D * Hp, Wp), lambda b: (b, 0, 0))),
        compiler_params=pltpu.CompilerParams(dimension_semantics=("parallel",)),
    )(x4, p["wfold"].reshape(C, 1))

    # ---- tiny glue in plain JAX (all tensors ~B*C or B*D*Hp*Wp floats,
    #      far below one MXU tile / one vreg -- not kernel-worthy, per review)
    hi = jax.lax.Precision.HIGHEST
    ym2 = ym.reshape(B, C)
    h = _elu(jnp.dot(ym2, p["W1f"], precision=hi) + p["b1f"])
    y_fc = _sigmoid(jnp.dot(h, p["W2f"], precision=hi) + p["b2f"])       # (B, C)

    pooled = pooled_raw.reshape(B, D, Hp, Wp)
    padded = jnp.pad(pooled, ((0, 0), (1, 1), (1, 1), (1, 1)))
    q = jnp.full((B, D, Hp, Wp), shift3, jnp.float32)
    for kd in range(3):                      # 3x3x3 conv (+folded BN) on the pooled map
        for kh in range(3):
            for kw in range(3):
                q = q + float(w3f[kd, kh, kw]) * \
                    padded[:, kd:kd + D, kh:kh + Hp, kw:kw + Wp]
    q2 = _elu(q).reshape(B, D, Hp * Wp)                                   # (B, D, Hp*Wp)

    # ---- kernel 3: trilinear (1,8,8) upsample as ONE MXU matmul,
    #                1x1x1 conv (+BN) + sigmoid, and the x*(y+z) combine,
    #                all on a lane-dense (C, D, H*W) block.
    x_l = x.reshape(B, C, D, HW)             # metadata-only; H*W is a multiple of 128
    y_col = y_fc.reshape(B, C, 1)
    sz_col = p["sz"].reshape(C, 1)
    tz_col = p["tz"].reshape(C, 1)
    Umap = p["Umap"]                         # (Hp*Wp, H*W)

    def k3(x_ref, y_ref, q_ref, u_ref, sz_ref, tz_ref, out_ref):
        # upsample: (D, Hp*Wp) x (Hp*Wp, H*W) on the MXU
        u = jnp.dot(q_ref[0], u_ref[...],
                    preferred_element_type=jnp.float32)          # (D, H*W)
        y3 = y_ref[0][:, :, None]                                # (C, 1, 1)
        sz3 = sz_ref[...][:, :, None]                            # (C, 1, 1)
        tz3 = tz_ref[...][:, :, None]                            # (C, 1, 1)
        zpre = sz3 * u[None, :, :] + tz3                         # (C, D, H*W)
        # sigmoid via EUP exp + approx reciprocal (frees VALU slots)
        z = pl.reciprocal(1.0 + jnp.exp(-zpre), approx=True)
        out_ref[...] = (x_ref[0] * (y3 + z))[None]               # x*y + x*z == x*(y+z)

    out_l = pl.pallas_call(
        k3,
        out_shape=jax.ShapeDtypeStruct((B, C, D, HW), jnp.float32),
        grid=(B,),
        in_specs=[pl.BlockSpec((1, C, D, HW), lambda b: (b, 0, 0, 0)),
                  pl.BlockSpec((1, C, 1), lambda b: (b, 0, 0)),
                  pl.BlockSpec((1, D, Hp * Wp), lambda b: (b, 0, 0)),
                  pl.BlockSpec((Hp * Wp, HW), lambda b: (0, 0)),
                  pl.BlockSpec((C, 1), lambda b: (0, 0)),
                  pl.BlockSpec((C, 1), lambda b: (0, 0))],
        out_specs=pl.BlockSpec((1, C, D, HW), lambda b: (b, 0, 0, 0)),
        compiler_params=pltpu.CompilerParams(dimension_semantics=("parallel",)),
    )(x_l, y_col, q2, Umap, sz_col, tz_col)

    return out_l.reshape(B, C, D, H, W)


# ----------------------------------------------------------------------------
# pure-JAX reference (same folded parameters)
# ----------------------------------------------------------------------------
def reference(x, p):
    B, C, D, H, W = x.shape
    Hp, Wp = H // 8, W // 8
    hi = jax.lax.Precision.HIGHEST

    ym = jnp.mean(x, axis=(2, 3, 4))                                   # (B, C)
    h = _elu(jnp.dot(ym, p["W1f"], precision=hi) + p["b1f"])
    y = _sigmoid(jnp.dot(h, p["W2f"], precision=hi) + p["b2f"])        # (B, C)

    a = jnp.einsum("bcdhw,c->bdhw", x, p["wfold"], precision=hi) + p["cshift"]
    a = _elu(a)
    pooled = a.reshape(B, D, Hp, 8, Wp, 8).max(axis=(3, 5))            # (B,D,Hp,Wp)
    padded = jnp.pad(pooled, ((0, 0), (1, 1), (1, 1), (1, 1)))
    q = jnp.full((B, D, Hp, Wp), p["shift3"], jnp.float32)
    for kd in range(3):
        for kh in range(3):
            for kw in range(3):
                q = q + float(p["w3f"][kd, kh, kw]) * padded[:, kd:kd + D, kh:kh + Hp, kw:kw + Wp]
    q = _elu(q)
    u = jnp.einsum("hi,bdij,jw->bdhw", p["Wh"], q, p["Wwt"], precision=hi)
    z = _sigmoid(p["sz"][None, :, None, None, None] * u[:, None] +
                 p["tz"][None, :, None, None, None])
    return x * y[:, :, None, None, None] + x * z


# ----------------------------------------------------------------------------
if __name__ == "__main__":
    B, C, D, H, W = 2, 8, 2, 16, 16   # channel=8, reduction=4
    key = jax.random.PRNGKey(0)
    kx, kp = jax.random.split(key)
    x = jax.random.normal(kx, (B, C, D, H, W), dtype=jnp.float32)
    params = make_params(kp, C, 4, H, W)

    out = se_layer_cs_pallas(x, params)
    out = jax.block_until_ready(out)

    ref = reference(x, params)
    np.testing.assert_allclose(np.asarray(out), np.asarray(ref), rtol=5e-3, atol=5e-3)
    print("KERNEL_OK")
</pallas_src>

<mosaic_0001>
module attributes {stable_mosaic.version = 11 : i64} {
  func.func @k1(%arg0: i32, %arg1: memref<1x8x32x16xf32, #tpu.memory_space<vmem>>, %arg2: memref<8x1xf32, #tpu.memory_space<vmem>>, %arg3: memref<1x8x1x1xf32, #tpu.memory_space<vmem>>, %arg4: memref<1x4x2xf32, #tpu.memory_space<vmem>>) attributes {dimension_semantics = [#tpu.dimension_semantics<parallel>], iteration_bounds = array<i64: 2>, scalar_prefetch = 0 : i64, scratch_operands = 0 : i64, tpu.core_type = #tpu.core_type<tc>, window_params = [{transform_indices = @transform_0, window_bounds = array<i64: 1, 8, 32, 16>}, {pipeline_mode = #tpu.pipeline_mode<synchronous>, transform_indices = @transform_1, window_bounds = array<i64: 8, 1>}, {transform_indices = @transform_2, window_bounds = array<i64: 1, 8, 1, 1>}, {transform_indices = @transform_3, window_bounds = array<i64: 1, 4, 2>}]} {
    %c0 = arith.constant 0 : index
    %c0_0 = arith.constant 0 : index
    %c0_1 = arith.constant 0 : index
    %c0_2 = arith.constant 0 : index
    %0 = vector.load %arg1[%c0, %c0_0, %c0_1, %c0_2] : memref<1x8x32x16xf32, #tpu.memory_space<vmem>>, vector<1x8x32x16xf32>
    %1 = vector.shape_cast %0 : vector<1x8x32x16xf32> to vector<8x32x16xf32>
    %cst = arith.constant dense<0.000000e+00> : vector<8x32xf32>
    %2 = vector.multi_reduction <add>, %1, %cst [2] : vector<8x32x16xf32> to vector<8x32xf32>
    %3 = vector.shape_cast %2 : vector<8x32xf32> to vector<8x32x1xf32>
    %cst_3 = arith.constant dense<0.000000e+00> : vector<8x1xf32>
    %4 = vector.multi_reduction <add>, %3, %cst_3 [1] : vector<8x32x1xf32> to vector<8x1xf32>
    %5 = vector.shape_cast %4 : vector<8x1xf32> to vector<8x1x1xf32>
    %cst_4 = arith.constant 0.001953125 : f32
    %6 = vector.broadcast %cst_4 : f32 to vector<8x1x1xf32>
    %7 = arith.mulf %5, %6 : vector<8x1x1xf32>
    %8 = vector.shape_cast %7 : vector<8x1x1xf32> to vector<1x8x1x1xf32>
    %c0_5 = arith.constant 0 : index
    %c0_6 = arith.constant 0 : index
    %c0_7 = arith.constant 0 : index
    %c0_8 = arith.constant 0 : index
    %9 = vector.load %arg3[%c0_5, %c0_6, %c0_7, %c0_8] : memref<1x8x1x1xf32, #tpu.memory_space<vmem>>, vector<1x8x1x1xf32>
    tpu.vector_store %arg3[%c0_5, %c0_6, %c0_7, %c0_8], %8 {strides = array<i32>} : memref<1x8x1x1xf32, #tpu.memory_space<vmem>>, vector<1x8x1x1xf32>,
    %c0_9 = arith.constant 0 : index
    %c0_10 = arith.constant 0 : index
    %10 = vector.load %arg2[%c0_9, %c0_10] : memref<8x1xf32, #tpu.memory_space<vmem>>, vector<8x1xf32>
    %11 = vector.shape_cast %10 : vector<8x1xf32> to vector<8x1x1xf32>
    %12 = vector.broadcast %11 : vector<8x1x1xf32> to vector<8x32x16xf32>
    %13 = arith.mulf %1, %12 : vector<8x32x16xf32>
    %cst_11 = arith.constant dense<0.000000e+00> : vector<32x16xf32>
    %14 = vector.multi_reduction <add>, %13, %cst_11 [0] : vector<8x32x16xf32> to vector<32x16xf32>
    %cst_12 = arith.constant -0.0657446161 : f32
    %15 = vector.broadcast %cst_12 : f32 to vector<32x16xf32>
    %16 = arith.addf %14, %15 : vector<32x16xf32>
    %cst_13 = arith.constant 0.000000e+00 : f32
    %17 = vector.broadcast %cst_13 : f32 to vector<32x16xf32>
    %18 = arith.cmpf ogt, %16, %17 : vector<32x16xf32>
    %19 = math.exp %16 : vector<32x16xf32>
    %cst_14 = arith.constant 1.000000e+00 : f32
    %20 = vector.broadcast %cst_14 : f32 to vector<32x16xf32>
    %21 = arith.subf %19, %20 : vector<32x16xf32>
    %22 = arith.select %18, %16, %21 : vector<32x16xi1>, vector<32x16xf32>
    %23 = vector.shape_cast %22 : vector<32x16xf32> to vector<4x8x16xf32>
    %cst_15 = arith.constant dense<0xFF800000> : vector<4x16xf32>
    %24 = vector.multi_reduction <maximumf>, %23, %cst_15 [1] : vector<4x8x16xf32> to vector<4x16xf32>
    %25 = vector.extract_strided_slice %24 {offsets = [0, 0], sizes = [4, 8], strides = [1, 1]} : vector<4x16xf32> to vector<4x8xf32>
    %cst_16 = arith.constant dense<0xFF800000> : vector<4xf32>
    %26 = vector.multi_reduction <maximumf>, %25, %cst_16 [1] : vector<4x8xf32> to vector<4xf32>
    %27 = vector.shape_cast %26 : vector<4xf32> to vector<4x1xf32>
    %c0_17 = arith.constant 0 : index
    %c0_18 = arith.constant 0 : index
    %c0_19 = arith.constant 0 : index
    %28 = vector.load %arg4[%c0_17, %c0_18, %c0_19] : memref<1x4x2xf32, #tpu.memory_space<vmem>>, vector<1x4x1xf32>
    %29 = vector.shape_cast %28 : vector<1x4x1xf32> to vector<4x1xf32>
    %30 = vector.shape_cast %27 : vector<4x1xf32> to vector<1x4x1xf32>
    tpu.vector_store %arg4[%c0_17, %c0_18, %c0_19], %30 {strides = array<i32>} : memref<1x4x2xf32, #tpu.memory_space<vmem>>, vector<1x4x1xf32>,
    %31 = vector.extract_strided_slice %24 {offsets = [0, 8], sizes = [4, 8], strides = [1, 1]} : vector<4x16xf32> to vector<4x8xf32>
    %cst_20 = arith.constant dense<0xFF800000> : vector<4xf32>
    %32 = vector.multi_reduction <maximumf>, %31, %cst_20 [1] : vector<4x8xf32> to vector<4xf32>
    %33 = vector.shape_cast %32 : vector<4xf32> to vector<4x1xf32>
    %c0_21 = arith.constant 0 : index
    %c0_22 = arith.constant 0 : index
    %c1 = arith.constant 1 : index
    %34 = vector.load %arg4[%c0_21, %c0_22, %c1] : memref<1x4x2xf32, #tpu.memory_space<vmem>>, vector<1x4x1xf32>
    %35 = vector.shape_cast %34 : vector<1x4x1xf32> to vector<4x1xf32>
    %36 = vector.shape_cast %33 : vector<4x1xf32> to vector<1x4x1xf32>
    tpu.vector_store %arg4[%c0_21, %c0_22, %c1], %36 {strides = array<i32>} : memref<1x4x2xf32, #tpu.memory_space<vmem>>, vector<1x4x1xf32>,
    return
  }
  func.func @transform_0(%arg0: i32) -> (i32, i32, i32, i32) {
    %c0_i32 = arith.constant 0 : i32
    %c0_i32_0 = arith.constant 0 : i32
    %c0_i32_1 = arith.constant 0 : i32
    %c0_i32_2 = arith.constant 0 : i32
    return %arg0, %c0_i32, %c0_i32_0, %c0_i32_1 : i32, i32, i32, i32
  }
  func.func @transform_1(%arg0: i32) -> (i32, i32) {
    %c0_i32 = arith.constant 0 : i32
    %c0_i32_0 = arith.constant 0 : i32
    %c0_i32_1 = arith.constant 0 : i32
    return %c0_i32, %c0_i32_0 : i32, i32
  }
  func.func @transform_2(%arg0: i32) -> (i32, i32, i32, i32) {
    %c0_i32 = arith.constant 0 : i32
    %c0_i32_0 = arith.constant 0 : i32
    %c0_i32_1 = arith.constant 0 : i32
    %c0_i32_2 = arith.constant 0 : i32
    return %arg0, %c0_i32, %c0_i32_0, %c0_i32_1 : i32, i32, i32, i32
  }
  func.func @transform_3(%arg0: i32) -> (i32, i32, i32) {
    %c0_i32 = arith.constant 0 : i32
    %c0_i32_0 = arith.constant 0 : i32
    %c0_i32_1 = arith.constant 0 : i32
    return %arg0, %c0_i32, %c0_i32_0 : i32, i32, i32
  }
}

</mosaic_0001>

<llo_original>
// kernel: tpu_custom_call.1
$region0: #{tpu_custom_call.1}
  #allocation0 [shape = 'u32[]', space=smem, size = 0x4, offset = 0x4, fixed_abs, tag = 'smem constant byte address 0x4 - core index']
  #allocation1 [shape = 'u32[144,128]{1,0:T(1,128)}', space=vmem, size = 0x12000, scoped, tag = 'internal scratch']
  %s0 = inlined_call_operand.vmem [shape: f32[2,8,32,16], index: 0, kind: input, shape index: {}]
  %s1 = inlined_call_operand.vmem [shape: f32[8,1], index: 1, kind: input, shape index: {}]
  %s2 = inlined_call_operand.vmem [shape: f32[2,8,1,1], index: 2, kind: output, shape index: {0}]
  %s3 = inlined_call_operand.vmem [shape: f32[2,4,2], index: 3, kind: output, shape index: {1}]
  %4 = xla_tuple %s2, %s3
  %s5 = sld [smem:[#allocation0]]
  $region49: #{tpu_custom_call.1} parent=0
    _
  %s7 = ssub.s32 1, %s5
  %s8 = scalar_select 0, %s7, %s5
  loop: start=0, step=1, limit=4
  $region2: #{tpu_custom_call.1} parent=0 // loop_pre_header
    _
  $region3: #{tpu_custom_call.1} parent=0 // loop_header
    %s10 = sphi 0, %s14
    %p11 = scmp.ge.s32.totalorder %s10, 4
    %s20 = sphi 0, %s22
    %s23 = sphi 0, %s20
    %s24 = sphi 0, %s23
    %s40 = sphi 0, %s24
    %s44 = sphi 0, %s44
    %s46 = sphi 0, %s44
    %s47 = sphi 0, %s46
    %s61 = sphi 0, %s47
    %s67 = sphi 0, %s69
    %s70 = sphi 0, %s67
    %s71 = sphi 0, %s70
    %s87 = sphi 0, %s71
    %s93 = sphi 0, %s95
    %s96 = sphi 0, %s93
    %s97 = sphi 0, %s96
    %s113 = sphi 0, %s97
  $region4: #{tpu_custom_call.1} parent=0 // loop_header_branch
    %13 = sbr.rel (%p11) target = $region8
  $region5: #{tpu_custom_call.1} parent=0 // loop_body
    %s15 = ssub.s32 %s10, 1
    %s16 = ssub.s32 %s10, 2
    %s17 = sadd.s32 %s10, 1
    %s18 = ssub.s32 %s10, %s17
    %p19 = scmp.eq.s32.totalorder %s18, 0
    %s21 = sadd.s32 %s20, 1
    %s22 = scalar_select %p19, %s20, %s21
    %p25 = pneg %p19
    %p26 = scmp.eq.s32.totalorder %s10, 1
    %p27 = por %p25, %p26
    %p28 = scmp.ne.s32.totalorder %s20, %s23
    %p29 = scmp.eq.s32.totalorder %s10, 0
    %p30 = por %p28, %p29
    %p31 = scmp.ne.s32.totalorder %s20, %s23
    %p32 = scmp.eq.s32.totalorder %s15, 1
    %p33 = por %p31, %p32
    %p34 = scmp.ne.s32.totalorder %s23, %s24
    %p35 = scmp.eq.s32.totalorder %s15, 0
    %p36 = por %p34, %p35
    %p37 = scmp.ne.s32.totalorder %s23, %s24
    %p38 = scmp.eq.s32.totalorder %s16, 1
    %p39 = por %p37, %p38
    %p41 = scmp.ne.s32.totalorder %s24, %s40
    %p42 = scmp.eq.s32.totalorder %s16, 0
    %p43 = por %p41, %p42
    %s45 = sadd.s32 %s44, 1
    %p48 = scmp.eq.s32.totalorder %s10, 1
    %p49 = scmp.ne.s32.totalorder %s44, %s46
    %p50 = scmp.eq.s32.totalorder %s10, 0
    %p51 = por %p49, %p50
    %p52 = scmp.ne.s32.totalorder %s44, %s46
    %p53 = scmp.eq.s32.totalorder %s15, 1
    %p54 = por %p52, %p53
    %p55 = scmp.ne.s32.totalorder %s46, %s47
    %p56 = scmp.eq.s32.totalorder %s15, 0
    %p57 = por %p55, %p56
    %p58 = scmp.ne.s32.totalorder %s46, %s47
    %p59 = scmp.eq.s32.totalorder %s16, 1
    %p60 = por %p58, %p59
    %p62 = scmp.ne.s32.totalorder %s47, %s61
    %p63 = scmp.eq.s32.totalorder %s16, 0
    %p64 = por %p62, %p63
    %s65 = ssub.s32 %s10, %s17
    %p66 = scmp.eq.s32.totalorder %s65, 0
    %s68 = sadd.s32 %s67, 1
    %s69 = scalar_select %p66, %s67, %s68
    %p72 = pneg %p66
    %p73 = scmp.eq.s32.totalorder %s10, 1
    %p74 = por %p72, %p73
    %p75 = scmp.ne.s32.totalorder %s67, %s70
    %p76 = scmp.eq.s32.totalorder %s10, 0
    %p77 = por %p75, %p76
    %p78 = scmp.ne.s32.totalorder %s67, %s70
    %p79 = scmp.eq.s32.totalorder %s15, 1
    %p80 = por %p78, %p79
    %p81 = scmp.ne.s32.totalorder %s70, %s71
    %p82 = scmp.eq.s32.totalorder %s15, 0
    %p83 = por %p81, %p82
    %p84 = scmp.ne.s32.totalorder %s70, %s71
    %p85 = scmp.eq.s32.totalorder %s16, 1
    %p86 = por %p84, %p85
    %p88 = scmp.ne.s32.totalorder %s71, %s87
    %p89 = scmp.eq.s32.totalorder %s16, 0
    %p90 = por %p88, %p89
    %s91 = ssub.s32 %s10, %s17
    %p92 = scmp.eq.s32.totalorder %s91, 0
    %s94 = sadd.s32 %s93, 1
    %s95 = scalar_select %p92, %s93, %s94
    %p98 = pneg %p92
    %p99 = scmp.eq.s32.totalorder %s10, 1
    %p100 = por %p98, %p99
    %p101 = scmp.ne.s32.totalorder %s93, %s96
    %p102 = scmp.eq.s32.totalorder %s10, 0
    %p103 = por %p101, %p102
    %p104 = scmp.ne.s32.totalorder %s93, %s96
    %p105 = scmp.eq.s32.totalorder %s15, 1
    %p106 = por %p104, %p105
    %p107 = scmp.ne.s32.totalorder %s96, %s97
    %p108 = scmp.eq.s32.totalorder %s15, 0
    %p109 = por %p107, %p108
    %p110 = scmp.ne.s32.totalorder %s96, %s97
    %p111 = scmp.eq.s32.totalorder %s16, 1
    %p112 = por %p110, %p111
    %p114 = scmp.ne.s32.totalorder %s97, %s113
    %p115 = scmp.eq.s32.totalorder %s16, 0
    %p116 = por %p114, %p115
    %p117 = scmp.le.s32.totalorder 1, %s10
    %p118 = scmp.lt.s32.totalorder %s10, 3
    %p119 = pnand %p117, %p118
    %p120 = pneg %p119
    // Predicated region
    $region9: #{tpu_custom_call.1} parent=5 // pred_check
      _
    $region10: #{tpu_custom_call.1} parent=5 // pred_check_branch
      %122 = sbr.rel (%p119) target = $region12
    $region11: #{tpu_custom_call.1} parent=5 // pred_region
      %s123 = ssub.s32 %s10, 1
      // Predicated region
      $region13: #{tpu_custom_call.1} parent=11 // pred_check
        %p124 = pneg %p57
      $region14: #{tpu_custom_call.1} parent=11 // pred_check_branch
        %126 = sbr.rel (%p124) target = $region16
      $region15: #{tpu_custom_call.1} parent=11 // pred_region
        _
      $region16: #{tpu_custom_call.1} parent=11 // pred_fallthru
        _
    $region12: #{tpu_custom_call.1} parent=5 // pred_fallthru
      _
    %p127 = scmp.lt.s32.totalorder %s10, 2
    // Predicated region
    $region17: #{tpu_custom_call.1} parent=5 // pred_check
      %p128 = pneg %p127
    $region18: #{tpu_custom_call.1} parent=5 // pred_check_branch
      %130 = sbr.rel (%p128) target = $region20
    $region19: #{tpu_custom_call.1} parent=5 // pred_region
      // Predicated region
      $region21: #{tpu_custom_call.1} parent=19 // pred_check
        %p131 = pneg %p30
      $region22: #{tpu_custom_call.1} parent=19 // pred_check_branch
        %133 = sbr.rel (%p131) target = $region24
      $region23: #{tpu_custom_call.1} parent=19 // pred_region
        %p134 = scmp.lt.s32.totalorder %s10, 1
        %s135 = scalar_select %p134, %s10, 1
        %s136 = smul.addr %s135, 32
        %s137 = smul.addr %s136, 8
        %s138 = scalar_lea.vmem %s0, %s137
      $region24: #{tpu_custom_call.1} parent=19 // pred_fallthru
        _
    $region20: #{tpu_custom_call.1} parent=5 // pred_fallthru
      _
    %p139 = scmp.le.s32.totalorder 1, %s10
    %p140 = scmp.lt.s32.totalorder %s10, 3
    %p141 = pnand %p139, %p140
    %p142 = pneg %p141
    // Predicated region
    $region25: #{tpu_custom_call.1} parent=5 // pred_check
      _
    $region26: #{tpu_custom_call.1} parent=5 // pred_check_branch
      %144 = sbr.rel (%p141) target = $region28
    $region27: #{tpu_custom_call.1} parent=5 // pred_region
      %s145 = ssub.s32 %s10, 1
      %p146 = scmp.lt.s32.totalorder %s15, 1
      %s147 = scalar_select %p146, %s15, 1
      %s148 = smul.addr %s147, 32
      %s149 = smul.addr %s148, 8
      %s150 = scalar_lea.vmem %s0, %s149
      %p151 = pneg %p36
      %p152 = pneg %p33
      %p153 = pneg %p57
      %p154 = pneg %p54
      %p155 = pneg %p83
      %p156 = pneg %p80
      %p157 = scmp.lt.s32.totalorder %s15, 1
      %s158 = scalar_select %p157, %s15, 1
      %s159 = smul.addr %s158, 8
      %s160 = scalar_lea.vmem %s2, %s159
      %p161 = pneg %p109
      %p162 = pneg %p106
      %p163 = scmp.lt.s32.totalorder %s15, 1
      %s164 = scalar_select %p163, %s15, 1
      %s165 = smul.addr %s164, 4
      %s166 = scalar_lea.vmem %s3, %s165
      %p167 = scmp.lt.s32.totalorder %s15, 1
      %s168 = scalar_select %p167, %s15, 1
      %s169 = smul.addr %s168, 32
      %s170 = smul.addr %s169, 8
      %s171 = scalar_lea.vmem %s0, %s170
      %p172 = scmp.lt.s32.totalorder %s15, 1
      %s173 = scalar_select %p172, %s15, 1
      %s174 = smul.addr %s173, 8
      %s175 = scalar_lea.vmem %s2, %s174
      %p176 = scmp.lt.s32.totalorder %s15, 1
      %s177 = scalar_select %p176, %s15, 1
      %s178 = smul.addr %s177, 4
      %s179 = scalar_lea.vmem %s3, %s178
      %v180 = vld [vmem:[%s171] sm:$0xff]
      %v181 = vld [vmem:[%s171 + $0x8] sm:$0xff]
      %v182 = vld [vmem:[%s171 + $0x10] sm:$0xff]
      %v183 = vld [vmem:[%s171 + $0x18] sm:$0xff]
      %v184 = vld [vmem:[%s171 + $0x20] sm:$0xff]
      %v185 = vld [vmem:[%s171 + $0x28] sm:$0xff]
      %v186 = vld [vmem:[%s171 + $0x30] sm:$0xff]
      %v187 = vld [vmem:[%s171 + $0x38] sm:$0xff]
      %v188 = vld [vmem:[%s171 + $0x40] sm:$0xff]
      %v189 = vld [vmem:[%s171 + $0x48] sm:$0xff]
      %v190 = vld [vmem:[%s171 + $0x50] sm:$0xff]
      %v191 = vld [vmem:[%s171 + $0x58] sm:$0xff]
      %v192 = vld [vmem:[%s171 + $0x60] sm:$0xff]
      %v193 = vld [vmem:[%s171 + $0x68] sm:$0xff]
      %v194 = vld [vmem:[%s171 + $0x70] sm:$0xff]
      %v195 = vld [vmem:[%s171 + $0x78] sm:$0xff]
      %v196 = vld [vmem:[%s171 + $0x80] sm:$0xff]
      %v197 = vld [vmem:[%s171 + $0x88] sm:$0xff]
      %v198 = vld [vmem:[%s171 + $0x90] sm:$0xff]
      %v199 = vld [vmem:[%s171 + $0x98] sm:$0xff]
      %v200 = vld [vmem:[%s171 + $0xa0] sm:$0xff]
      %v201 = vld [vmem:[%s171 + $0xa8] sm:$0xff]
      %v202 = vld [vmem:[%s171 + $0xb0] sm:$0xff]
      %v203 = vld [vmem:[%s171 + $0xb8] sm:$0xff]
      %v204 = vld [vmem:[%s171 + $0xc0] sm:$0xff]
      %v205 = vld [vmem:[%s171 + $0xc8] sm:$0xff]
      %v206 = vld [vmem:[%s171 + $0xd0] sm:$0xff]
      %v207 = vld [vmem:[%s171 + $0xd8] sm:$0xff]
      %v208 = vld [vmem:[%s171 + $0xe0] sm:$0xff]
      %v209 = vld [vmem:[%s171 + $0xe8] sm:$0xff]
      %v210 = vld [vmem:[%s171 + $0xf0] sm:$0xff]
      %v211 = vld [vmem:[%s171 + $0xf8] sm:$0xff]
      %vm212 = vcmask 130048
      %v213 = vsel %vm212, %v180, 0.0
      %214 = vadd.xlane.f32.xlu0 %v213
      %v215 = vpop.xlane.xlu0 %214
      %v216 = vsel %vm212, %v181, 0.0
      %217 = vadd.xlane.f32.xlu0 %v216
      %v218 = vpop.xlane.xlu0 %217
      %v219 = vsel %vm212, %v182, 0.0
      %220 = vadd.xlane.f32.xlu0 %v219
      %v221 = vpop.xlane.xlu0 %220
      %v222 = vsel %vm212, %v183, 0.0
      %223 = vadd.xlane.f32.xlu0 %v222
      %v224 = vpop.xlane.xlu0 %223
      %v225 = vsel %vm212, %v184, 0.0
      %226 = vadd.xlane.f32.xlu0 %v225
      %v227 = vpop.xlane.xlu0 %226
      %v228 = vsel %vm212, %v185, 0.0
      %229 = vadd.xlane.f32.xlu0 %v228
      %v230 = vpop.xlane.xlu0 %229
      %v231 = vsel %vm212, %v186, 0.0
      %232 = vadd.xlane.f32.xlu0 %v231
      %v233 = vpop.xlane.xlu0 %232
      %v234 = vsel %vm212, %v187, 0.0
      %235 = vadd.xlane.f32.xlu0 %v234
      %v236 = vpop.xlane.xlu0 %235
      %v237 = vsel %vm212, %v188, 0.0
      %238 = vadd.xlane.f32.xlu0 %v237
      %v239 = vpop.xlane.xlu0 %238
      %v240 = vsel %vm212, %v189, 0.0
      %241 = vadd.xlane.f32.xlu0 %v240
      %v242 = vpop.xlane.xlu0 %241
      %v243 = vsel %vm212, %v190, 0.0
      %244 = vadd.xlane.f32.xlu0 %v243
      %v245 = vpop.xlane.xlu0 %244
      %v246 = vsel %vm212, %v191, 0.0
      %247 = vadd.xlane.f32.xlu0 %v246
      %v248 = vpop.xlane.xlu0 %247
      %v249 = vsel %vm212, %v192, 0.0
      %250 = vadd.xlane.f32.xlu0 %v249
      %v251 = vpop.xlane.xlu0 %250
      %v252 = vsel %vm212, %v193, 0.0
      %253 = vadd.xlane.f32.xlu0 %v252
      %v254 = vpop.xlane.xlu0 %253
      %v255 = vsel %vm212, %v194, 0.0
      %256 = vadd.xlane.f32.xlu0 %v255
      %v257 = vpop.xlane.xlu0 %256
      %v258 = vsel %vm212, %v195, 0.0
      %259 = vadd.xlane.f32.xlu0 %v258
      %v260 = vpop.xlane.xlu0 %259
      %v261 = vsel %vm212, %v196, 0.0
      %262 = vadd.xlane.f32.xlu0 %v261
      %v263 = vpop.xlane.xlu0 %262
      %v264 = vsel %vm212, %v197, 0.0
      %265 = vadd.xlane.f32.xlu0 %v264
      %v266 = vpop.xlane.xlu0 %265
      %v267 = vsel %vm212, %v198, 0.0
      %268 = vadd.xlane.f32.xlu0 %v267
      %v269 = vpop.xlane.xlu0 %268
      %v270 = vsel %vm212, %v199, 0.0
      %271 = vadd.xlane.f32.xlu0 %v270
      %v272 = vpop.xlane.xlu0 %271
      %v273 = vsel %vm212, %v200, 0.0
      %274 = vadd.xlane.f32.xlu0 %v273
      %v275 = vpop.xlane.xlu0 %274
      %v276 = vsel %vm212, %v201, 0.0
      %277 = vadd.xlane.f32.xlu0 %v276
      %v278 = vpop.xlane.xlu0 %277
      %v279 = vsel %vm212, %v202, 0.0
      %280 = vadd.xlane.f32.xlu0 %v279
      %v281 = vpop.xlane.xlu0 %280
      %v282 = vsel %vm212, %v203, 0.0
      %283 = vadd.xlane.f32.xlu0 %v282
      %v284 = vpop.xlane.xlu0 %283
      %v285 = vsel %vm212, %v204, 0.0
      %286 = vadd.xlane.f32.xlu0 %v285
      %v287 = vpop.xlane.xlu0 %286
      %v288 = vsel %vm212, %v205, 0.0
      %289 = vadd.xlane.f32.xlu0 %v288
      %v290 = vpop.xlane.xlu0 %289
      %v291 = vsel %vm212, %v206, 0.0
      %292 = vadd.xlane.f32.xlu0 %v291
      %v293 = vpop.xlane.xlu0 %292
      %v294 = vsel %vm212, %v207, 0.0
      %295 = vadd.xlane.f32.xlu0 %v294
      %v296 = vpop.xlane.xlu0 %295
      %v297 = vsel %vm212, %v208, 0.0
      %298 = vadd.xlane.f32.xlu0 %v297
      %v299 = vpop.xlane.xlu0 %298
      %v300 = vsel %vm212, %v209, 0.0
      %301 = vadd.xlane.f32.xlu0 %v300
      %v302 = vpop.xlane.xlu0 %301
      %v303 = vsel %vm212, %v210, 0.0
      %304 = vadd.xlane.f32.xlu0 %v303
      %v305 = vpop.xlane.xlu0 %304
      %v306 = vsel %vm212, %v211, 0.0
      %307 = vadd.xlane.f32.xlu0 %v306
      %v308 = vpop.xlane.xlu0 %307
      %v309 = vadd.f32 %v215, %v218
      %v310 = vadd.f32 %v309, %v221
      %v311 = vadd.f32 %v310, %v224
      %v312 = vrot.slane %v311, 4
      %v313 = vadd.f32 %v311, %v312
      %v314 = vrot.slane %v313, 2
      %v315 = vadd.f32 %v313, %v314
      %v316 = vrot.slane %v315, 1
      %v317 = vadd.f32 %v315, %v316
      %v318 = vadd.f32 %v227, %v230
      %v319 = vadd.f32 %v318, %v233
      %v320 = vadd.f32 %v319, %v236
      %v321 = vrot.slane %v320, 4
      %v322 = vadd.f32 %v320, %v321
      %v323 = vrot.slane %v322, 2
      %v324 = vadd.f32 %v322, %v323
      %v325 = vrot.slane %v324, 1
      %v326 = vadd.f32 %v324, %v325
      %v327 = vadd.f32 %v239, %v242
      %v328 = vadd.f32 %v327, %v245
      %v329 = vadd.f32 %v328, %v248
      %v330 = vrot.slane %v329, 4
      %v331 = vadd.f32 %v329, %v330
      %v332 = vrot.slane %v331, 2
      %v333 = vadd.f32 %v331, %v332
      %v334 = vrot.slane %v333, 1
      %v335 = vadd.f32 %v333, %v334
      %v336 = vadd.f32 %v251, %v254
      %v337 = vadd.f32 %v336, %v257
      %v338 = vadd.f32 %v337, %v260
      %v339 = vrot.slane %v338, 4
      %v340 = vadd.f32 %v338, %v339
      %v341 = vrot.slane %v340, 2
      %v342 = vadd.f32 %v340, %v341
      %v343 = vrot.slane %v342, 1
      %v344 = vadd.f32 %v342, %v343
      %v345 = vadd.f32 %v263, %v266
      %v346 = vadd.f32 %v345, %v269
      %v347 = vadd.f32 %v346, %v272
      %v348 = vrot.slane %v347, 4
      %v349 = vadd.f32 %v347, %v348
      %v350 = vrot.slane %v349, 2
      %v351 = vadd.f32 %v349, %v350
      %v352 = vrot.slane %v351, 1
      %v353 = vadd.f32 %v351, %v352
      %v354 = vadd.f32 %v275, %v278
      %v355 = vadd.f32 %v354, %v281
      %v356 = vadd.f32 %v355, %v284
      %v357 = vrot.slane %v356, 4
      %v358 = vadd.f32 %v356, %v357
      %v359 = vrot.slane %v358, 2
      %v360 = vadd.f32 %v358, %v359
      %v361 = vrot.slane %v360, 1
      %v362 = vadd.f32 %v360, %v361
      %v363 = vadd.f32 %v287, %v290
      %v364 = vadd.f32 %v363, %v293
      %v365 = vadd.f32 %v364, %v296
      %v366 = vrot.slane %v365, 4
      %v367 = vadd.f32 %v365, %v366
      %v368 = vrot.slane %v367, 2
      %v369 = vadd.f32 %v367, %v368
      %v370 = vrot.slane %v369, 1
      %v371 = vadd.f32 %v369, %v370
      %v372 = vadd.f32 %v299, %v302
      %v373 = vadd.f32 %v372, %v305
      %v374 = vadd.f32 %v373, %v308
      %v375 = vrot.slane %v374, 4
      %v376 = vadd.f32 %v374, %v375
      %v377 = vrot.slane %v376, 2
      %v378 = vadd.f32 %v376, %v377
      %v379 = vrot.slane %v378, 1
      %v380 = vadd.f32 %v378, %v379
      %v381 = vmul.f32 %v317, 0.001953125
      %v382 = vmul.f32 %v326, 0.001953125
      %v383 = vmul.f32 %v335, 0.001953125
      %v384 = vmul.f32 %v344, 0.001953125
      %v385 = vmul.f32 %v353, 0.001953125
      %v386 = vmul.f32 %v362, 0.001953125
      %v387 = vmul.f32 %v371, 0.001953125
      %v388 = vmul.f32 %v380, 0.001953125
      %vm389 = vcmask 0
      %390 = vst.msk [vmem:[%s175] sm:$0x1] %vm389, %v381
      %391 = vst.msk [vmem:[%s175 + $0x1] sm:$0x1] %vm389, %v382
      %392 = vst.msk [vmem:[%s175 + $0x2] sm:$0x1] %vm389, %v383
      %393 = vst.msk [vmem:[%s175 + $0x3] sm:$0x1] %vm389, %v384
      %394 = vst.msk [vmem:[%s175 + $0x4] sm:$0x1] %vm389, %v385
      %395 = vst.msk [vmem:[%s175 + $0x5] sm:$0x1] %vm389, %v386
      %396 = vst.msk [vmem:[%s175 + $0x6] sm:$0x1] %vm389, %v387
      %397 = vst.msk [vmem:[%s175 + $0x7] sm:$0x1] %vm389, %v388
      %v398 = vld [vmem:[%s1] sm:$0xff]
      %v400 = vcombine.high %v398, %v398
      %v402 = vunpack.c.l.s4 1966171168
      %v403 = vunpack.c.0.s8 %v402
      %v404 = vlaneseq
      %v405 = vshrl.u32 %v404, 7
      %v406 = vsub.s32 %v403, %v405
      %v407 = vrot.slane %v398, %v406
      %v409 = vunpack.c.l.s4 1966171168
      %v410 = vunpack.c.0.s8 %v409
      %v411 = vlaneseq
      %v412 = vshrl.u32 %v411, 7
      %v413 = vsub.s32 %v410, %v412
      %v414 = vrot.slane %v400, %v413
      %v415 = vcombine.high %v407, %v407
      %v416 = vcombine.high %v414, %v414
      %v418 = vunpack.c.l.s4 1966171168
      %v419 = vunpack.c.0.s8 %v418
      %v420 = vlaneseq
      %v421 = vshrl.u32 %v420, 7
      %v422 = vsub.s32 %v419, %v421
      %v423 = vrot.slane %v407, %v422
      %v425 = vunpack.c.l.s4 1966171168
      %v426 = vunpack.c.0.s8 %v425
      %v427 = vlaneseq
      %v428 = vshrl.u32 %v427, 7
      %v429 = vsub.s32 %v426, %v428
      %v430 = vrot.slane %v414, %v429
      %v432 = vunpack.c.l.s4 1966171168
      %v433 = vunpack.c.0.s8 %v432
      %v434 = vlaneseq
      %v435 = vshrl.u32 %v434, 7
      %v436 = vsub.s32 %v433, %v435
      %v437 = vrot.slane %v415, %v436
      %v439 = vunpack.c.l.s4 1966171168
      %v440 = vunpack.c.0.s8 %v439
      %v441 = vlaneseq
      %v442 = vshrl.u32 %v441, 7
      %v443 = vsub.s32 %v440, %v442
      %v444 = vrot.slane %v416, %v443
      %v445 = vcombine.high %v423, %v423
      %v446 = vcombine.high %v430, %v430
      %v447 = vcombine.high %v437, %v437
      %v448 = vcombine.high %v444, %v444
      %v449 = vlaneseq
      %v450 = vshrl.u32 %v449, 7
      %v451 = vsub.s32 0, %v450
      %v452 = vrot.slane %v423, %v451
      %v453 = vlaneseq
      %v454 = vshrl.u32 %v453, 7
      %v455 = vsub.s32 0, %v454
      %v456 = vrot.slane %v437, %v455
      %v457 = vlaneseq
      %v458 = vshrl.u32 %v457, 7
      %v459 = vsub.s32 0, %v458
      %v460 = vrot.slane %v445, %v459
      %v461 = vlaneseq
      %v462 = vshrl.u32 %v461, 7
      %v463 = vsub.s32 0, %v462
      %v464 = vrot.slane %v447, %v463
      %v465 = vlaneseq
      %v466 = vshrl.u32 %v465, 7
      %v467 = vsub.s32 0, %v466
      %v468 = vrot.slane %v430, %v467
      %v469 = vlaneseq
      %v470 = vshrl.u32 %v469, 7
      %v471 = vsub.s32 0, %v470
      %v472 = vrot.slane %v444, %v471
      %v473 = vlaneseq
      %v474 = vshrl.u32 %v473, 7
      %v475 = vsub.s32 0, %v474
      %v476 = vrot.slane %v446, %v475
      %v477 = vlaneseq
      %v478 = vshrl.u32 %v477, 7
      %v479 = vsub.s32 0, %v478
      %v480 = vrot.slane %v448, %v479
      %481 = vset.pattern.permute.xlu0 0
      %482 = vperm.xlu0 %481, %v452
      %v483 = vpop.permute.xlu0 %482
      %485 = vset.pattern.permute.xlu0 0
      %486 = vperm.xlu0 %485, %v456
      %v487 = vpop.permute.xlu0 %486
      %489 = vset.pattern.permute.xlu0 0
      %490 = vperm.xlu0 %489, %v460
      %v491 = vpop.permute.xlu0 %490
      %493 = vset.pattern.permute.xlu0 0
      %494 = vperm.xlu0 %493, %v464
      %v495 = vpop.permute.xlu0 %494
      %497 = vset.pattern.permute.xlu0 0
      %498 = vperm.xlu0 %497, %v468
      %v499 = vpop.permute.xlu0 %498
      %501 = vset.pattern.permute.xlu0 0
      %502 = vperm.xlu0 %501, %v472
      %v503 = vpop.permute.xlu0 %502
      %505 = vset.pattern.permute.xlu0 0
      %506 = vperm.xlu0 %505, %v476
      %v507 = vpop.permute.xlu0 %506
      %509 = vset.pattern.permute.xlu0 0
      %510 = vperm.xlu0 %509, %v480
      %v511 = vpop.permute.xlu0 %510
      %v513 = vmul.f32 %v180, %v483
      %v514 = vmul.f32 %v181, %v483
      %v515 = vmul.f32 %v182, %v483
      %v516 = vmul.f32 %v183, %v483
      %v517 = vmul.f32 %v184, %v487
      %v518 = vmul.f32 %v185, %v487
      %v519 = vmul.f32 %v186, %v487
      %v520 = vmul.f32 %v187, %v487
      %v521 = vmul.f32 %v188, %v491
      %v522 = vmul.f32 %v189, %v491
      %v523 = vmul.f32 %v190, %v491
      %v524 = vmul.f32 %v191, %v491
      %v525 = vmul.f32 %v192, %v495
      %v526 = vmul.f32 %v193, %v495
      %v527 = vmul.f32 %v194, %v495
      %v528 = vmul.f32 %v195, %v495
      %v529 = vmul.f32 %v196, %v499
      %v530 = vmul.f32 %v197, %v499
      %v531 = vmul.f32 %v198, %v499
      %v532 = vmul.f32 %v199, %v499
      %v533 = vmul.f32 %v200, %v503
      %v534 = vmul.f32 %v201, %v503
      %v535 = vmul.f32 %v202, %v503
      %v536 = vmul.f32 %v203, %v503
      %v537 = vmul.f32 %v204, %v507
      %v538 = vmul.f32 %v205, %v507
      %v539 = vmul.f32 %v206, %v507
      %v540 = vmul.f32 %v207, %v507
      %v541 = vmul.f32 %v208, %v511
      %v542 = vmul.f32 %v209, %v511
      %v543 = vmul.f32 %v210, %v511
      %v544 = vmul.f32 %v211, %v511
      %v545 = vsel %vm212, %v513, 0.0
      %v546 = vsel %vm212, %v517, 0.0
      %v547 = vadd.f32 %v545, %v546
      %v548 = vsel %vm212, %v521, 0.0
      %v549 = vadd.f32 %v547, %v548
      %v550 = vsel %vm212, %v525, 0.0
      %v551 = vadd.f32 %v549, %v550
      %v552 = vsel %vm212, %v529, 0.0
      %v553 = vadd.f32 %v551, %v552
      %v554 = vsel %vm212, %v533, 0.0
      %v555 = vadd.f32 %v553, %v554
      %v556 = vsel %vm212, %v537, 0.0
      %v557 = vadd.f32 %v555, %v556
      %v558 = vsel %vm212, %v541, 0.0
      %v559 = vadd.f32 %v557, %v558
      %v560 = vsel %vm212, %v514, 0.0
      %v561 = vsel %vm212, %v518, 0.0
      %v562 = vadd.f32 %v560, %v561
      %v563 = vsel %vm212, %v522, 0.0
      %v564 = vadd.f32 %v562, %v563
      %v565 = vsel %vm212, %v526, 0.0
      %v566 = vadd.f32 %v564, %v565
      %v567 = vsel %vm212, %v530, 0.0
      %v568 = vadd.f32 %v566, %v567
      %v569 = vsel %vm212, %v534, 0.0
      %v570 = vadd.f32 %v568, %v569
      %v571 = vsel %vm212, %v538, 0.0
      %v572 = vadd.f32 %v570, %v571
      %v573 = vsel %vm212, %v542, 0.0
      %v574 = vadd.f32 %v572, %v573
      %v575 = vsel %vm212, %v515, 0.0
      %v576 = vsel %vm212, %v519, 0.0
      %v577 = vadd.f32 %v575, %v576
      %v578 = vsel %vm212, %v523, 0.0
      %v579 = vadd.f32 %v577, %v578
      %v580 = vsel %vm212, %v527, 0.0
      %v581 = vadd.f32 %v579, %v580
      %v582 = vsel %vm212, %v531, 0.0
      %v583 = vadd.f32 %v581, %v582
      %v584 = vsel %vm212, %v535, 0.0
      %v585 = vadd.f32 %v583, %v584
      %v586 = vsel %vm212, %v539, 0.0
      %v587 = vadd.f32 %v585, %v586
      %v588 = vsel %vm212, %v543, 0.0
      %v589 = vadd.f32 %v587, %v588
      %v590 = vsel %vm212, %v516, 0.0
      %v591 = vsel %vm212, %v520, 0.0
      %v592 = vadd.f32 %v590, %v591
      %v593 = vsel %vm212, %v524, 0.0
      %v594 = vadd.f32 %v592, %v593
      %v595 = vsel %vm212, %v528, 0.0
      %v596 = vadd.f32 %v594, %v595
      %v597 = vsel %vm212, %v532, 0.0
      %v598 = vadd.f32 %v596, %v597
      %v599 = vsel %vm212, %v536, 0.0
      %v600 = vadd.f32 %v598, %v599
      %v601 = vsel %vm212, %v540, 0.0
      %v602 = vadd.f32 %v600, %v601
      %v603 = vsel %vm212, %v544, 0.0
      %v604 = vadd.f32 %v602, %v603
      %v605 = vadd.f32 %v559, -0.065744616
      %v606 = vadd.f32 %v574, -0.065744616
      %v607 = vadd.f32 %v589, -0.065744616
      %v608 = vadd.f32 %v604, -0.065744616
      %vm609 = vcmp.gt.f32.partialorder %v605, 0.0
      %vm610 = vcmp.gt.f32.partialorder %v606, 0.0
      %vm611 = vcmp.gt.f32.partialorder %v607, 0.0
      %vm612 = vcmp.gt.f32.partialorder %v608, 0.0
      %v613 = vmul.f32 %v605, 1.442695
      %v614 = vpow.pop %v613
      %v615 = vmul.f32 %v606, 1.442695
      %v616 = vpow.pop %v615
      %v617 = vmul.f32 %v607, 1.442695
      %v618 = vpow.pop %v617
      %v619 = vmul.f32 %v608, 1.442695
      %v620 = vpow.pop %v619
      %v621 = vsub.f32 %v614, 1.0
      %v622 = vsub.f32 %v616, 1.0
      %v623 = vsub.f32 %v618, 1.0
      %v624 = vsub.f32 %v620, 1.0
      %v625 = vsel %vm609, %v605, %v621
      %v626 = vsel %vm610, %v606, %v622
      %v627 = vsel %vm611, %v607, %v623
      %v628 = vsel %vm612, %v608, %v624
      %v629 = vsel %vm212, %v625, -inf
      %v630 = vrot.slane %v629, 4
      %v631 = vmax.f32 %v629, %v630
      %v632 = vrot.slane %v631, 2
      %v633 = vmax.f32 %v631, %v632
      %v634 = vrot.slane %v633, 1
      %v635 = vmax.f32 %v633, %v634
      %v636 = vsel %vm212, %v626, -inf
      %v637 = vrot.slane %v636, 4
      %v638 = vmax.f32 %v636, %v637
      %v639 = vrot.slane %v638, 2
      %v640 = vmax.f32 %v638, %v639
      %v641 = vrot.slane %v640, 1
      %v642 = vmax.f32 %v640, %v641
      %v643 = vsel %vm212, %v627, -inf
      %v644 = vrot.slane %v643, 4
      %v645 = vmax.f32 %v643, %v644
      %v646 = vrot.slane %v645, 2
      %v647 = vmax.f32 %v645, %v646
      %v648 = vrot.slane %v647, 1
      %v649 = vmax.f32 %v647, %v648
      %v650 = vsel %vm212, %v628, -inf
      %v651 = vrot.slane %v650, 4
      %v652 = vmax.f32 %v650, %v651
      %v653 = vrot.slane %v652, 2
      %v654 = vmax.f32 %v652, %v653
      %v655 = vrot.slane %v654, 1
      %v656 = vmax.f32 %v654, %v655
      %vm661 = vcmask 1041409
      %v662 = vsel %vm661, %v642, %v635
      %vm663 = vcmask 1042434
      %v664 = vsel %vm663, %v649, %v662
      %vm665 = vcmask 1043459
      %v666 = vsel %vm665, %v656, %v664
      %vm668 = vcmask 60416
      %v669 = vsel %vm668, %v666, -inf
      %670 = vmax.xlane.f32.xlu0 %v669
      %v671 = vpop.xlane.xlu0 %670
      %vm672 = vcmask 3072
      %673 = vst.msk [vmem:[%s179] sm:$0xf] %vm672, %v671
      %vm674 = vcmask 126016
      %v675 = vsel %vm674, %v666, -inf
      %676 = vmax.xlane.f32.xlu0 %v675
      %v677 = vpop.xlane.xlu0 %676
      %vm678 = vcmask 11272
      %679 = vst.msk [vmem:[%s179] sm:$0xf] %vm678, %v677
      %p680 = scmp.lt.s32.totalorder %s15, 1
      %s681 = scalar_select %p680, %s15, 1
      %s682 = smul.addr %s681, 8
      %s683 = scalar_lea.vmem %s2, %s682
      %p684 = scmp.lt.s32.totalorder %s15, 1
      %s685 = scalar_select %p684, %s15, 1
      %s686 = smul.addr %s685, 4
      %s687 = scalar_lea.vmem %s3, %s686
      // Predicated region
      $region29: #{tpu_custom_call.1} parent=27 // pred_check
        %p688 = pneg %p80
      $region30: #{tpu_custom_call.1} parent=27 // pred_check_branch
        %690 = sbr.rel (%p688) target = $region32
      $region31: #{tpu_custom_call.1} parent=27 // pred_region
        _
      $region32: #{tpu_custom_call.1} parent=27 // pred_fallthru
        _
      // Predicated region
      $region33: #{tpu_custom_call.1} parent=27 // pred_check
        %p691 = pneg %p106
      $region34: #{tpu_custom_call.1} parent=27 // pred_check_branch
        %693 = sbr.rel (%p691) target = $region36
      $region35: #{tpu_custom_call.1} parent=27 // pred_region
        _
      $region36: #{tpu_custom_call.1} parent=27 // pred_fallthru
        _
    $region28: #{tpu_custom_call.1} parent=5 // pred_fallthru
      _
    %p694 = scmp.le.s32.totalorder 2, %s10
    // Predicated region
    $region37: #{tpu_custom_call.1} parent=5 // pred_check
      %p695 = pneg %p694
    $region38: #{tpu_custom_call.1} parent=5 // pred_check_branch
      %697 = sbr.rel (%p695) target = $region40
    $region39: #{tpu_custom_call.1} parent=5 // pred_region
      %s698 = ssub.s32 %s10, 2
      // Predicated region
      $region41: #{tpu_custom_call.1} parent=39 // pred_check
        %p699 = pneg %p86
      $region42: #{tpu_custom_call.1} parent=39 // pred_check_branch
        %701 = sbr.rel (%p699) target = $region44
      $region43: #{tpu_custom_call.1} parent=39 // pred_region
        %p702 = scmp.lt.s32.totalorder %s16, 1
        %s703 = scalar_select %p702, %s16, 1
        %s704 = smul.addr %s703, 8
        %s705 = scalar_lea.vmem %s2, %s704
      $region44: #{tpu_custom_call.1} parent=39 // pred_fallthru
        _
      // Predicated region
      $region45: #{tpu_custom_call.1} parent=39 // pred_check
        %p706 = pneg %p112
      $region46: #{tpu_custom_call.1} parent=39 // pred_check_branch
        %708 = sbr.rel (%p706) target = $region48
      $region47: #{tpu_custom_call.1} parent=39 // pred_region
        %p709 = scmp.lt.s32.totalorder %s16, 1
        %s710 = scalar_select %p709, %s16, 1
        %s711 = smul.addr %s710, 4
        %s712 = scalar_lea.vmem %s3, %s711
      $region48: #{tpu_custom_call.1} parent=39 // pred_fallthru
        _
    $region40: #{tpu_custom_call.1} parent=5 // pred_fallthru
      _
  $region6: #{tpu_custom_call.1} parent=0 // loop_footer
    %s14 = sadd.s32 1, %s10
  $region7: #{tpu_custom_call.1} parent=0 // loop_footer_branch
    %9 = sbr.rel target = $region3
  $region8: #{tpu_custom_call.1} parent=0 // loop_exit
    _

</llo_original>
